<compile_context>
chip_gen: v5e
topology: v5e:2x2
jax: 0.10.0
libtpu: 0.0.40
codegen_flags: <defaults>
</compile_context>

<pallas_src>
import functools

import jax
import jax.numpy as jnp
from jax import lax
from jax.experimental import pallas as pl
from jax.experimental.pallas import tpu as pltpu


def _mbconv_kernel(x_ref,        # (Cin,  BHW)  channels-major, batch folded into lanes
                   w_exp_ref,    # (Cexp, Cin)  BN scale folded in
                   w_dw_ref,     # (Cexp, 9)    BN scale folded in (f32, VPU path)
                   w_fc1_ref,    # (Cred, Cexp)
                   w_fc2_ref,    # (Cexp, Cred)
                   w_proj_ref,   # (Cout, Cexp) BN scale folded in
                   w_sc_ref,     # (Cout, Cout) BN scale folded in
                   bias_ref,     # (sumC_pad, 1) f32: be_e|be_d|b_fc1|b_fc2|be_p|be_s
                   aux_ref,      # (4+B, BHW)  f32: cm_l|cm_r|rm_u|rm_d|image membership
                   o_ref,        # (Cout, BHW)
                   *, B, W, HW, bias_off):
    f32 = jnp.float32
    BHW = x_ref.shape[1]
    Cexp = w_exp_ref.shape[0]
    Cred = w_fc1_ref.shape[0]
    Cout = w_proj_ref.shape[0]
    off_e, off_d, off_f1, off_f2, off_p, off_s = bias_off

    be_e = bias_ref[off_e:off_e + Cexp]
    be_d = bias_ref[off_d:off_d + Cexp]
    b_f1 = bias_ref[off_f1:off_f1 + Cred]
    b_f2 = bias_ref[off_f2:off_f2 + Cexp]
    be_p = bias_ref[off_p:off_p + Cout]
    be_s = bias_ref[off_s:off_s + Cout]

    cm_l = aux_ref[0:1]            # col-1 >= 0      (dx = -1 valid)
    cm_r = aux_ref[1:2]            # col+1 <= W-1    (dx = +1 valid)
    rm_u = aux_ref[2:3]            # row-1 >= 0      (dy = -1 valid, per image)
    rm_d = aux_ref[3:4]            # row+1 <= H-1    (dy = +1 valid, per image)
    bm = aux_ref[4:4 + B]          # (B, BHW) 0/1 image membership

    # ---- expand 1x1 conv (BN-folded) + bias + ReLU ------------------------------------
    e = jnp.dot(w_exp_ref[...], x_ref[...], preferred_element_type=f32)
    e = jnp.maximum(e + be_e, 0.0)                          # (Cexp, BHW) f32

    # ---- depthwise 3x3, stride 1, pad 1: factored row/col masks, 4 lane rolls ----------
    # Horizontally shifted, column-masked copies (zero padding within each row; any
    # cross-row / cross-image wrap from the roll is zeroed by the column mask).
    e_m1 = pltpu.roll(e, 1, axis=1) * cm_l                  # e_m1[p] = e[p-1]  (dx = -1)
    e_p1 = pltpu.roll(e, BHW - 1, axis=1) * cm_r            # e_p1[p] = e[p+1]  (dx = +1)

    w = w_dw_ref[...]                                       # tap index t = (dy+1)*3+(dx+1)

    def dy_taps(dy):
        t0 = (dy + 1) * 3
        return (e_m1 * w[:, t0:t0 + 1]
                + e * w[:, t0 + 1:t0 + 2]
                + e_p1 * w[:, t0 + 2:t0 + 3])

    d = dy_taps(0)
    d = d + pltpu.roll(dy_taps(-1), W, axis=1) * rm_u       # row above (per-image zero pad)
    d = d + pltpu.roll(dy_taps(+1), BHW - W, axis=1) * rm_d  # row below
    d = jnp.maximum(d + be_d, 0.0)                          # (Cexp, BHW) f32

    # ---- Squeeze-and-Excitation: per-image pool / gate via membership-matrix matmuls ---
    pooled = lax.dot_general(d, bm, (((1,), (1,)), ((), ())),
                             preferred_element_type=f32) * (1.0 / HW)      # (Cexp, B)
    h1 = jnp.dot(w_fc1_ref[...], pooled.astype(w_fc1_ref.dtype),
                 preferred_element_type=f32)
    h1 = jnp.maximum(h1 + b_f1, 0.0)                                       # (Cred, B)
    gate = jax.nn.sigmoid(
        jnp.dot(w_fc2_ref[...], h1.astype(w_fc2_ref.dtype),
                preferred_element_type=f32) + b_f2)                        # (Cexp, B)
    gate_full = jnp.dot(gate, bm, preferred_element_type=f32)              # (Cexp, BHW)
    s_act = d * gate_full

    # ---- project 1x1 conv (BN-folded) + bias + ReLU -------------------------------------
    p_out = jnp.dot(w_proj_ref[...], s_act.astype(w_proj_ref.dtype),
                    preferred_element_type=f32)
    p_out = jnp.maximum(p_out + be_p, 0.0)                                 # (Cout, BHW)

    # ---- residual: shortcut(conv1x1+BN+ReLU) applied to the *project output* -----------
    sc = jnp.dot(w_sc_ref[...], p_out.astype(w_sc_ref.dtype),
                 preferred_element_type=f32)
    sc = jnp.maximum(sc + be_s, 0.0)
    o_ref[...] = p_out + sc


def mbconv_block(x_nchw, params, *, matmul_dtype=jnp.float32,
                 vmem_limit_bytes=32 * 1024 * 1024):
    """Input NCHW, output NCHW. bf16 matmul operands are valid on v5e/v6e/v7x alike."""
    B, Cin, H, W = x_nchw.shape
    HW, BHW = H * W, B * H * W
    f32 = jnp.float32
    Cexp = params["w_exp"].shape[0]
    Cred = params["w_fc1"].shape[0]
    Cout = params["w_proj"].shape[0]

    # Channels-major with the batch folded into the lane axis: (Cin, B*H*W).
    x2 = jnp.transpose(x_nchw, (1, 0, 2, 3)).reshape(Cin, BHW).astype(matmul_dtype)

    # Fold BN scales into conv weights (per-output-channel row scaling).
    w_exp = (params["w_exp"].astype(f32) * params["se_e"][:, None]).astype(matmul_dtype)
    w_dw = params["w_dw"].astype(f32).reshape(Cexp, 9) * params["se_d"][:, None]  # f32 VPU
    w_fc1 = params["w_fc1"].astype(matmul_dtype)
    w_fc2 = params["w_fc2"].astype(matmul_dtype)
    w_proj = (params["w_proj"].astype(f32) * params["se_p"][:, None]).astype(matmul_dtype)
    w_sc = (params["w_sc"].astype(f32) * params["se_s"][:, None]).astype(matmul_dtype)

    # All per-channel bias columns in one operand; each segment padded to 8 sublanes so
    # the static in-kernel slices stay aligned.
    bias_vecs = [params["be_e"], params["be_d"], params["b_fc1"],
                 params["b_fc2"], params["be_p"], params["be_s"]]
    segs, offs, off = [], [], 0
    for v in bias_vecs:
        v = v.astype(f32)
        pad = (-v.shape[0]) % 8
        segs.append(jnp.pad(v, (0, pad)))
        offs.append(off)
        off += v.shape[0] + pad
    biases = jnp.concatenate(segs)[:, None]                                # (sumC_pad, 1)

    # Factored depthwise boundary masks (2 col + 2 row) + SE image-membership rows.
    pos = jnp.arange(BHW, dtype=jnp.int32)
    col, row, img = pos % W, (pos // W) % H, pos // HW
    aux = jnp.stack(
        [(col >= 1).astype(f32), (col <= W - 2).astype(f32),
         (row >= 1).astype(f32), (row <= H - 2).astype(f32)]
        + [(img == b).astype(f32) for b in range(B)], axis=0)              # (4+B, BHW)

    kernel = functools.partial(_mbconv_kernel, B=B, W=W, HW=HW, bias_off=tuple(offs))

    # Single fused step: no grid; every operand lives whole-array in VMEM (tiny at this
    # size).  See TODO at top for the spatial row-tile grid at realistic H*W / v7x VMEM.
    out = pl.pallas_call(
        kernel,
        out_shape=jax.ShapeDtypeStruct((Cout, BHW), f32),
        compiler_params=pltpu.CompilerParams(vmem_limit_bytes=vmem_limit_bytes),
    )(x2, w_exp, w_dw, w_fc1, w_fc2, w_proj, w_sc, biases, aux)

    return jnp.transpose(out.reshape(Cout, B, H, W), (1, 0, 2, 3))


def _fold_bn(key, c, eps=1e-5):
    k1, k2, k3, k4 = jax.random.split(key, 4)
    gamma = 1.0 + 0.1 * jax.random.normal(k1, (c,), jnp.float32)
    beta = 0.1 * jax.random.normal(k2, (c,), jnp.float32)
    mean = 0.1 * jax.random.normal(k3, (c,), jnp.float32)
    var = 1.0 + 0.1 * jnp.abs(jax.random.normal(k4, (c,), jnp.float32))
    scale = gamma / jnp.sqrt(var + eps)
    bias = beta - mean * scale
    return scale, bias


def init_params(key, c_in, c_out, expansion=4, se_reduction=4):
    c_exp = c_in * expansion
    c_red = c_exp // se_reduction
    ks = jax.random.split(key, 12)
    p = {}
    p["w_exp"] = 0.2 * jax.random.normal(ks[0], (c_exp, c_in), jnp.float32)
    p["se_e"], p["be_e"] = _fold_bn(ks[1], c_exp)
    p["w_dw"] = 0.2 * jax.random.normal(ks[2], (c_exp, 3, 3), jnp.float32)
    p["se_d"], p["be_d"] = _fold_bn(ks[3], c_exp)
    p["w_fc1"] = 0.2 * jax.random.normal(ks[4], (c_red, c_exp), jnp.float32)
    p["b_fc1"] = 0.1 * jax.random.normal(ks[5], (c_red,), jnp.float32)
    p["w_fc2"] = 0.2 * jax.random.normal(ks[6], (c_exp, c_red), jnp.float32)
    p["b_fc2"] = 0.1 * jax.random.normal(ks[7], (c_exp,), jnp.float32)
    p["w_proj"] = 0.2 * jax.random.normal(ks[8], (c_out, c_exp), jnp.float32)
    p["se_p"], p["be_p"] = _fold_bn(ks[9], c_out)
    p["w_sc"] = 0.2 * jax.random.normal(ks[10], (c_out, c_out), jnp.float32)
    p["se_s"], p["be_s"] = _fold_bn(ks[11], c_out)
    return p


def ref_forward(x_nchw, P):
    """Pure-JAX reference (same folded-BN inference / residual semantics, f32)."""
    x = x_nchw.astype(jnp.float32)
    B, Cin, H, W = x.shape
    HW = H * W
    Cexp = P["w_exp"].shape[0]
    xm = x.reshape(B, Cin, HW)
    e = jnp.einsum("ec,bcp->bep", P["w_exp"], xm)
    e = jnp.maximum(e * P["se_e"][None, :, None] + P["be_e"][None, :, None], 0.0)
    eim = e.reshape(B, Cexp, H, W)
    ep = jnp.pad(eim, ((0, 0), (0, 0), (1, 1), (1, 1)))
    d = jnp.zeros_like(eim)
    for ky in range(3):
        for kx in range(3):
            d = d + ep[:, :, ky:ky + H, kx:kx + W] * P["w_dw"][:, ky, kx][None, :, None, None]
    dm = d.reshape(B, Cexp, HW)
    dm = jnp.maximum(dm * P["se_d"][None, :, None] + P["be_d"][None, :, None], 0.0)
    pooled = dm.mean(axis=2)
    h1 = jnp.maximum(pooled @ P["w_fc1"].T + P["b_fc1"][None, :], 0.0)
    gate = jax.nn.sigmoid(h1 @ P["w_fc2"].T + P["b_fc2"][None, :])
    s = dm * gate[:, :, None]
    p = jnp.einsum("oe,bep->bop", P["w_proj"], s)
    p = jnp.maximum(p * P["se_p"][None, :, None] + P["be_p"][None, :, None], 0.0)
    sc = jnp.einsum("xo,bop->bxp", P["w_sc"], p)
    sc = jnp.maximum(sc * P["se_s"][None, :, None] + P["be_s"][None, :, None], 0.0)
    return (p + sc).reshape(B, -1, H, W)


if __name__ == "__main__":
    key = jax.random.PRNGKey(0)
    kx_, kp_ = jax.random.split(key)

    B, C_IN, SIDE = 2, 4, 16
    C_OUT = C_IN          # use_residual path (in == out, stride == 1)
    x = jax.random.normal(kx_, (B, C_IN, SIDE, SIDE), jnp.float32)   # NCHW, like PyTorch
    params = init_params(kp_, C_IN, C_OUT)

    ref = jax.block_until_ready(ref_forward(x, params))

    # f32 path (tight check)
    run_f32 = jax.jit(functools.partial(mbconv_block, matmul_dtype=jnp.float32))
    out = jax.block_until_ready(run_f32(x, params))
    assert out.shape == (B, C_OUT, SIDE, SIDE), out.shape
    assert jnp.allclose(out, ref, rtol=1e-4, atol=1e-4), float(jnp.max(jnp.abs(out - ref)))

    # bf16 matmul operands (good on v5e/v6e/v7x MXU), f32 accumulate / f32 elementwise
    run_bf16 = jax.jit(functools.partial(mbconv_block, matmul_dtype=jnp.bfloat16))
    out_bf16 = jax.block_until_ready(run_bf16(x, params))
    assert jnp.allclose(out_bf16, ref, rtol=5e-2, atol=5e-2), \
        float(jnp.max(jnp.abs(out_bf16 - ref)))

    print("KERNEL_OK")
</pallas_src>

<mosaic_0001>
module attributes {stable_mosaic.version = 11 : i64} {
  func.func @_mbconv_kernel(%arg0: memref<4x512xf32, #tpu.memory_space<vmem>>, %arg1: memref<16x4xf32, #tpu.memory_space<vmem>>, %arg2: memref<16x9xf32, #tpu.memory_space<vmem>>, %arg3: memref<4x16xf32, #tpu.memory_space<vmem>>, %arg4: memref<16x4xf32, #tpu.memory_space<vmem>>, %arg5: memref<4x16xf32, #tpu.memory_space<vmem>>, %arg6: memref<4x4xf32, #tpu.memory_space<vmem>>, %arg7: memref<72x1xf32, #tpu.memory_space<vmem>>, %arg8: memref<6x512xf32, #tpu.memory_space<vmem>>, %arg9: memref<4x512xf32, #tpu.memory_space<vmem>>) attributes {dimension_semantics = [], scalar_prefetch = 0 : i64, scratch_operands = 0 : i64, tpu.core_type = #tpu.core_type<tc>} {
    %c0 = arith.constant 0 : index
    %c0_0 = arith.constant 0 : index
    %0 = vector.load %arg7[%c0, %c0_0] : memref<72x1xf32, #tpu.memory_space<vmem>>, vector<16x1xf32>
    %c16 = arith.constant 16 : index
    %c0_1 = arith.constant 0 : index
    %1 = vector.load %arg7[%c16, %c0_1] : memref<72x1xf32, #tpu.memory_space<vmem>>, vector<16x1xf32>
    %c32 = arith.constant 32 : index
    %c0_2 = arith.constant 0 : index
    %2 = vector.load %arg7[%c32, %c0_2] : memref<72x1xf32, #tpu.memory_space<vmem>>, vector<4x1xf32>
    %c40 = arith.constant 40 : index
    %c0_3 = arith.constant 0 : index
    %3 = vector.load %arg7[%c40, %c0_3] : memref<72x1xf32, #tpu.memory_space<vmem>>, vector<16x1xf32>
    %c56 = arith.constant 56 : index
    %c0_4 = arith.constant 0 : index
    %4 = vector.load %arg7[%c56, %c0_4] : memref<72x1xf32, #tpu.memory_space<vmem>>, vector<4x1xf32>
    %c64 = arith.constant 64 : index
    %c0_5 = arith.constant 0 : index
    %5 = vector.load %arg7[%c64, %c0_5] : memref<72x1xf32, #tpu.memory_space<vmem>>, vector<4x1xf32>
    %c0_6 = arith.constant 0 : index
    %c0_7 = arith.constant 0 : index
    %6 = vector.load %arg8[%c0_6, %c0_7] : memref<6x512xf32, #tpu.memory_space<vmem>>, vector<1x512xf32>
    %c1 = arith.constant 1 : index
    %c0_8 = arith.constant 0 : index
    %7 = vector.load %arg8[%c1, %c0_8] : memref<6x512xf32, #tpu.memory_space<vmem>>, vector<1x512xf32>
    %c2 = arith.constant 2 : index
    %c0_9 = arith.constant 0 : index
    %8 = vector.load %arg8[%c2, %c0_9] : memref<6x512xf32, #tpu.memory_space<vmem>>, vector<1x512xf32>
    %c3 = arith.constant 3 : index
    %c0_10 = arith.constant 0 : index
    %9 = vector.load %arg8[%c3, %c0_10] : memref<6x512xf32, #tpu.memory_space<vmem>>, vector<1x512xf32>
    %c4 = arith.constant 4 : index
    %c0_11 = arith.constant 0 : index
    %10 = vector.load %arg8[%c4, %c0_11] : memref<6x512xf32, #tpu.memory_space<vmem>>, vector<2x512xf32>
    %c0_12 = arith.constant 0 : index
    %c0_13 = arith.constant 0 : index
    %11 = vector.load %arg1[%c0_12, %c0_13] : memref<16x4xf32, #tpu.memory_space<vmem>>, vector<16x4xf32>
    %c0_14 = arith.constant 0 : index
    %c0_15 = arith.constant 0 : index
    %12 = vector.load %arg0[%c0_14, %c0_15] : memref<4x512xf32, #tpu.memory_space<vmem>>, vector<4x512xf32>
    %cst = arith.constant dense<0.000000e+00> : vector<16x512xf32>
    %13 = tpu.matmul %11, %12, %cst {dimension_numbers = #tpu.dot_dimension_numbers<[1], [0], [0], [1], [0, 0, 1, 1], [], []>} : vector<16x4xf32>, vector<4x512xf32>, vector<16x512xf32> -> vector<16x512xf32>
    %14 = vector.broadcast %0 : vector<16x1xf32> to vector<16x512xf32>
    %15 = arith.addf %13, %14 : vector<16x512xf32>
    %cst_16 = arith.constant 0.000000e+00 : f32
    %16 = vector.broadcast %cst_16 : f32 to vector<16x512xf32>
    %17 = arith.maximumf %15, %16 : vector<16x512xf32>
    %c1_i32 = arith.constant 1 : i32
    %18 = tpu.dynamic_rotate %17 by %c1_i32 dim 1 : vector<16x512xf32>, i32 -> vector<16x512xf32>
    %19 = vector.broadcast %6 : vector<1x512xf32> to vector<16x512xf32>
    %20 = arith.mulf %18, %19 : vector<16x512xf32>
    %c511_i32 = arith.constant 511 : i32
    %21 = tpu.dynamic_rotate %17 by %c511_i32 dim 1 : vector<16x512xf32>, i32 -> vector<16x512xf32>
    %22 = vector.broadcast %7 : vector<1x512xf32> to vector<16x512xf32>
    %23 = arith.mulf %21, %22 : vector<16x512xf32>
    %c0_17 = arith.constant 0 : index
    %c0_18 = arith.constant 0 : index
    %24 = vector.load %arg2[%c0_17, %c0_18] : memref<16x9xf32, #tpu.memory_space<vmem>>, vector<16x9xf32>
    %25 = vector.extract_strided_slice %24 {offsets = [0, 3], sizes = [16, 1], strides = [1, 1]} : vector<16x9xf32> to vector<16x1xf32>
    %26 = vector.broadcast %25 : vector<16x1xf32> to vector<16x512xf32>
    %27 = arith.mulf %20, %26 : vector<16x512xf32>
    %28 = vector.extract_strided_slice %24 {offsets = [0, 4], sizes = [16, 1], strides = [1, 1]} : vector<16x9xf32> to vector<16x1xf32>
    %29 = vector.broadcast %28 : vector<16x1xf32> to vector<16x512xf32>
    %30 = arith.mulf %17, %29 : vector<16x512xf32>
    %31 = arith.addf %27, %30 : vector<16x512xf32>
    %32 = vector.extract_strided_slice %24 {offsets = [0, 5], sizes = [16, 1], strides = [1, 1]} : vector<16x9xf32> to vector<16x1xf32>
    %33 = vector.broadcast %32 : vector<16x1xf32> to vector<16x512xf32>
    %34 = arith.mulf %23, %33 : vector<16x512xf32>
    %35 = arith.addf %31, %34 : vector<16x512xf32>
    %36 = vector.extract_strided_slice %24 {offsets = [0, 0], sizes = [16, 1], strides = [1, 1]} : vector<16x9xf32> to vector<16x1xf32>
    %37 = vector.broadcast %36 : vector<16x1xf32> to vector<16x512xf32>
    %38 = arith.mulf %20, %37 : vector<16x512xf32>
    %39 = vector.extract_strided_slice %24 {offsets = [0, 1], sizes = [16, 1], strides = [1, 1]} : vector<16x9xf32> to vector<16x1xf32>
    %40 = vector.broadcast %39 : vector<16x1xf32> to vector<16x512xf32>
    %41 = arith.mulf %17, %40 : vector<16x512xf32>
    %42 = arith.addf %38, %41 : vector<16x512xf32>
    %43 = vector.extract_strided_slice %24 {offsets = [0, 2], sizes = [16, 1], strides = [1, 1]} : vector<16x9xf32> to vector<16x1xf32>
    %44 = vector.broadcast %43 : vector<16x1xf32> to vector<16x512xf32>
    %45 = arith.mulf %23, %44 : vector<16x512xf32>
    %46 = arith.addf %42, %45 : vector<16x512xf32>
    %c16_i32 = arith.constant 16 : i32
    %47 = tpu.dynamic_rotate %46 by %c16_i32 dim 1 : vector<16x512xf32>, i32 -> vector<16x512xf32>
    %48 = vector.broadcast %8 : vector<1x512xf32> to vector<16x512xf32>
    %49 = arith.mulf %47, %48 : vector<16x512xf32>
    %50 = arith.addf %35, %49 : vector<16x512xf32>
    %51 = vector.extract_strided_slice %24 {offsets = [0, 6], sizes = [16, 1], strides = [1, 1]} : vector<16x9xf32> to vector<16x1xf32>
    %52 = vector.broadcast %51 : vector<16x1xf32> to vector<16x512xf32>
    %53 = arith.mulf %20, %52 : vector<16x512xf32>
    %54 = vector.extract_strided_slice %24 {offsets = [0, 7], sizes = [16, 1], strides = [1, 1]} : vector<16x9xf32> to vector<16x1xf32>
    %55 = vector.broadcast %54 : vector<16x1xf32> to vector<16x512xf32>
    %56 = arith.mulf %17, %55 : vector<16x512xf32>
    %57 = arith.addf %53, %56 : vector<16x512xf32>
    %58 = vector.extract_strided_slice %24 {offsets = [0, 8], sizes = [16, 1], strides = [1, 1]} : vector<16x9xf32> to vector<16x1xf32>
    %59 = vector.broadcast %58 : vector<16x1xf32> to vector<16x512xf32>
    %60 = arith.mulf %23, %59 : vector<16x512xf32>
    %61 = arith.addf %57, %60 : vector<16x512xf32>
    %c496_i32 = arith.constant 496 : i32
    %62 = tpu.dynamic_rotate %61 by %c496_i32 dim 1 : vector<16x512xf32>, i32 -> vector<16x512xf32>
    %63 = vector.broadcast %9 : vector<1x512xf32> to vector<16x512xf32>
    %64 = arith.mulf %62, %63 : vector<16x512xf32>
    %65 = arith.addf %50, %64 : vector<16x512xf32>
    %66 = vector.broadcast %1 : vector<16x1xf32> to vector<16x512xf32>
    %67 = arith.addf %65, %66 : vector<16x512xf32>
    %cst_19 = arith.constant 0.000000e+00 : f32
    %68 = vector.broadcast %cst_19 : f32 to vector<16x512xf32>
    %69 = arith.maximumf %67, %68 : vector<16x512xf32>
    %cst_20 = arith.constant dense<0.000000e+00> : vector<16x2xf32>
    %70 = tpu.matmul %69, %10, %cst_20 {dimension_numbers = #tpu.dot_dimension_numbers<[1], [1], [0], [0], [0, 0, 1, 0], [], []>} : vector<16x512xf32>, vector<2x512xf32>, vector<16x2xf32> -> vector<16x2xf32>
    %cst_21 = arith.constant 3.906250e-03 : f32
    %71 = vector.broadcast %cst_21 : f32 to vector<16x2xf32>
    %72 = arith.mulf %70, %71 : vector<16x2xf32>
    %c0_22 = arith.constant 0 : index
    %c0_23 = arith.constant 0 : index
    %73 = vector.load %arg3[%c0_22, %c0_23] : memref<4x16xf32, #tpu.memory_space<vmem>>, vector<4x16xf32>
    %cst_24 = arith.constant dense<0.000000e+00> : vector<4x2xf32>
    %74 = tpu.matmul %73, %72, %cst_24 {dimension_numbers = #tpu.dot_dimension_numbers<[1], [0], [0], [1], [0, 0, 1, 1], [], []>} : vector<4x16xf32>, vector<16x2xf32>, vector<4x2xf32> -> vector<4x2xf32>
    %75 = vector.broadcast %2 : vector<4x1xf32> to vector<4x2xf32>
    %76 = arith.addf %74, %75 : vector<4x2xf32>
    %cst_25 = arith.constant 0.000000e+00 : f32
    %77 = vector.broadcast %cst_25 : f32 to vector<4x2xf32>
    %78 = arith.maximumf %76, %77 : vector<4x2xf32>
    %c0_26 = arith.constant 0 : index
    %c0_27 = arith.constant 0 : index
    %79 = vector.load %arg4[%c0_26, %c0_27] : memref<16x4xf32, #tpu.memory_space<vmem>>, vector<16x4xf32>
    %cst_28 = arith.constant dense<0.000000e+00> : vector<16x2xf32>
    %80 = tpu.matmul %79, %78, %cst_28 {dimension_numbers = #tpu.dot_dimension_numbers<[1], [0], [0], [1], [0, 0, 1, 1], [], []>} : vector<16x4xf32>, vector<4x2xf32>, vector<16x2xf32> -> vector<16x2xf32>
    %81 = vector.broadcast %3 : vector<16x1xf32> to vector<16x2xf32>
    %82 = arith.addf %80, %81 : vector<16x2xf32>
    %83 = arith.negf %82 : vector<16x2xf32>
    %84 = math.exp %83 : vector<16x2xf32>
    %cst_29 = arith.constant 1.000000e+00 : f32
    %85 = vector.broadcast %cst_29 : f32 to vector<16x2xf32>
    %86 = arith.addf %85, %84 : vector<16x2xf32>
    %87 = arith.divf %85, %86 : vector<16x2xf32>
    %cst_30 = arith.constant dense<0.000000e+00> : vector<16x512xf32>
    %88 = tpu.matmul %87, %10, %cst_30 {dimension_numbers = #tpu.dot_dimension_numbers<[1], [0], [0], [1], [0, 0, 1, 1], [], []>} : vector<16x2xf32>, vector<2x512xf32>, vector<16x512xf32> -> vector<16x512xf32>
    %89 = arith.mulf %69, %88 : vector<16x512xf32>
    %c0_31 = arith.constant 0 : index
    %c0_32 = arith.constant 0 : index
    %90 = vector.load %arg5[%c0_31, %c0_32] : memref<4x16xf32, #tpu.memory_space<vmem>>, vector<4x16xf32>
    %cst_33 = arith.constant dense<0.000000e+00> : vector<4x512xf32>
    %91 = tpu.matmul %90, %89, %cst_33 {dimension_numbers = #tpu.dot_dimension_numbers<[1], [0], [0], [1], [0, 0, 1, 1], [], []>} : vector<4x16xf32>, vector<16x512xf32>, vector<4x512xf32> -> vector<4x512xf32>
    %92 = vector.broadcast %4 : vector<4x1xf32> to vector<4x512xf32>
    %93 = arith.addf %91, %92 : vector<4x512xf32>
    %cst_34 = arith.constant 0.000000e+00 : f32
    %94 = vector.broadcast %cst_34 : f32 to vector<4x512xf32>
    %95 = arith.maximumf %93, %94 : vector<4x512xf32>
    %c0_35 = arith.constant 0 : index
    %c0_36 = arith.constant 0 : index
    %96 = vector.load %arg6[%c0_35, %c0_36] : memref<4x4xf32, #tpu.memory_space<vmem>>, vector<4x4xf32>
    %cst_37 = arith.constant dense<0.000000e+00> : vector<4x512xf32>
    %97 = tpu.matmul %96, %95, %cst_37 {dimension_numbers = #tpu.dot_dimension_numbers<[1], [0], [0], [1], [0, 0, 1, 1], [], []>} : vector<4x4xf32>, vector<4x512xf32>, vector<4x512xf32> -> vector<4x512xf32>
    %98 = vector.broadcast %5 : vector<4x1xf32> to vector<4x512xf32>
    %99 = arith.addf %97, %98 : vector<4x512xf32>
    %cst_38 = arith.constant 0.000000e+00 : f32
    %100 = vector.broadcast %cst_38 : f32 to vector<4x512xf32>
    %101 = arith.maximumf %99, %100 : vector<4x512xf32>
    %102 = arith.addf %95, %101 : vector<4x512xf32>
    %c0_39 = arith.constant 0 : index
    %c0_40 = arith.constant 0 : index
    %103 = vector.load %arg9[%c0_39, %c0_40] : memref<4x512xf32, #tpu.memory_space<vmem>>, vector<4x512xf32>
    tpu.vector_store %arg9[%c0_39, %c0_40], %102 {strides = array<i32>} : memref<4x512xf32, #tpu.memory_space<vmem>>, vector<4x512xf32>,
    return
  }
}

</mosaic_0001>

<llo_original>
// kernel: mbconv_block.1
$region0: #{mbconv_block.1}
  #allocation0 [shape = 'u32[]', space=smem, size = 0x4, offset = 0x4, fixed_abs, tag = 'smem constant byte address 0x4 - core index']
  #allocation1 [shape = 'u32[72,128]{1,0:T(1,128)}', space=vmem, size = 0x9000, scoped, tag = 'internal scratch']
  %s0 = inlined_call_operand.vmem [shape: f32[4,512], index: 0, kind: input, shape index: {}]
  %s1 = inlined_call_operand.vmem [shape: f32[16,4], index: 1, kind: input, shape index: {}]
  %s2 = inlined_call_operand.vmem [shape: f32[16,9], index: 2, kind: input, shape index: {}]
  %s3 = inlined_call_operand.vmem [shape: f32[4,16], index: 3, kind: input, shape index: {}]
  %s4 = inlined_call_operand.vmem [shape: f32[16,4], index: 4, kind: input, shape index: {}]
  %s5 = inlined_call_operand.vmem [shape: f32[4,16], index: 5, kind: input, shape index: {}]
  %s6 = inlined_call_operand.vmem [shape: f32[4,4], index: 6, kind: input, shape index: {}]
  %s7 = inlined_call_operand.vmem [shape: f32[72,1], index: 7, kind: input, shape index: {}]
  %s8 = inlined_call_operand.vmem [shape: f32[6,512], index: 8, kind: input, shape index: {}]
  %s9 = inlined_call_operand.vmem [shape: f32[4,512], index: 9, kind: output, shape index: {}]
  %s10 = sld [smem:[#allocation0]]
  $region46: #{mbconv_block.1} parent=0
    _
  %s12 = ssub.s32 1, %s10
  %s13 = scalar_select 0, %s12, %s10
  // Predicated region
  $region2: #{mbconv_block.1} parent=0 // pred_check
    _
  $region3: #{mbconv_block.1} parent=0 // pred_check_branch
    %15 = sbr.rel (0) target = $region5
  $region4: #{mbconv_block.1} parent=0 // pred_region
    _
  $region5: #{mbconv_block.1} parent=0 // pred_fallthru
    _
  // Predicated region
  $region6: #{mbconv_block.1} parent=0 // pred_check
    _
  $region7: #{mbconv_block.1} parent=0 // pred_check_branch
    %17 = sbr.rel (0) target = $region9
  $region8: #{mbconv_block.1} parent=0 // pred_region
    _
  $region9: #{mbconv_block.1} parent=0 // pred_fallthru
    _
  // Predicated region
  $region10: #{mbconv_block.1} parent=0 // pred_check
    _
  $region11: #{mbconv_block.1} parent=0 // pred_check_branch
    %19 = sbr.rel (0) target = $region13
  $region12: #{mbconv_block.1} parent=0 // pred_region
    _
  $region13: #{mbconv_block.1} parent=0 // pred_fallthru
    _
  // Predicated region
  $region14: #{mbconv_block.1} parent=0 // pred_check
    _
  $region15: #{mbconv_block.1} parent=0 // pred_check_branch
    %21 = sbr.rel (0) target = $region17
  $region16: #{mbconv_block.1} parent=0 // pred_region
    _
  $region17: #{mbconv_block.1} parent=0 // pred_fallthru
    _
  // Predicated region
  $region18: #{mbconv_block.1} parent=0 // pred_check
    _
  $region19: #{mbconv_block.1} parent=0 // pred_check_branch
    %23 = sbr.rel (0) target = $region21
  $region20: #{mbconv_block.1} parent=0 // pred_region
    _
  $region21: #{mbconv_block.1} parent=0 // pred_fallthru
    _
  // Predicated region
  $region22: #{mbconv_block.1} parent=0 // pred_check
    _
  $region23: #{mbconv_block.1} parent=0 // pred_check_branch
    %25 = sbr.rel (0) target = $region25
  $region24: #{mbconv_block.1} parent=0 // pred_region
    _
  $region25: #{mbconv_block.1} parent=0 // pred_fallthru
    _
  // Predicated region
  $region26: #{mbconv_block.1} parent=0 // pred_check
    _
  $region27: #{mbconv_block.1} parent=0 // pred_check_branch
    %27 = sbr.rel (0) target = $region29
  $region28: #{mbconv_block.1} parent=0 // pred_region
    _
  $region29: #{mbconv_block.1} parent=0 // pred_fallthru
    _
  // Predicated region
  $region30: #{mbconv_block.1} parent=0 // pred_check
    _
  $region31: #{mbconv_block.1} parent=0 // pred_check_branch
    %29 = sbr.rel (0) target = $region33
  $region32: #{mbconv_block.1} parent=0 // pred_region
    _
  $region33: #{mbconv_block.1} parent=0 // pred_fallthru
    _
  // Predicated region
  $region34: #{mbconv_block.1} parent=0 // pred_check
    _
  $region35: #{mbconv_block.1} parent=0 // pred_check_branch
    %31 = sbr.rel (0) target = $region37
  $region36: #{mbconv_block.1} parent=0 // pred_region
    _
  $region37: #{mbconv_block.1} parent=0 // pred_fallthru
    _
  %v32 = vld [vmem:[%s7] sm:$0xff]
  %v33 = vld [vmem:[%s7 + $0x8] sm:$0xff]
  %v34 = vld [vmem:[%s7 + $0x10] sm:$0xff]
  %v35 = vld [vmem:[%s7 + $0x18] sm:$0xff]
  %v36 = vld [vmem:[%s7 + $0x20] sm:$0xf]
  %v37 = vld [vmem:[%s7 + $0x28] sm:$0xff]
  %v38 = vld [vmem:[%s7 + $0x30] sm:$0xff]
  %v39 = vld [vmem:[%s7 + $0x38] sm:$0xf]
  %v40 = vld [vmem:[%s7 + $0x40] sm:$0xf]
  %v41 = vld [vmem:[%s8] ss:$8 sm:$0xf]
  %s42 = scalar_lea.vmem %s8, 1
  %v43 = vld [vmem:[%s42] ss:$8 sm:$0xf]
  %s44 = scalar_lea.vmem %s8, 2
  %v45 = vld [vmem:[%s44] ss:$8 sm:$0xf]
  %s46 = scalar_lea.vmem %s8, 3
  %v47 = vld [vmem:[%s46] ss:$8 sm:$0xf]
  %v48 = vld [vmem:[%s8] sm:$0x30]
  %v49 = vld [vmem:[%s8 + $0x8] sm:$0x30]
  %v50 = vld [vmem:[%s8 + $0x10] sm:$0x30]
  %v51 = vld [vmem:[%s8 + $0x18] sm:$0x30]
  %v52 = vld [vmem:[%s1] sm:$0xff]
  %v53 = vld [vmem:[%s1 + $0x8] sm:$0xff]
  %v54 = vld [vmem:[%s0] sm:$0xff]
  %v55 = vld [vmem:[%s0 + $0x8] sm:$0xff]
  %57 = vset.pattern.permute.xlu0 0
  %58 = vperm.xlu0 %57, %v32
  %v59 = vpop.permute.xlu0 %58
  %62 = vset.pattern.permute.xlu0 0
  %63 = vperm.xlu0 %62, %v33
  %v64 = vpop.permute.xlu0 %63
  %68 = vst [vmem:[#allocation1] ss:$2 sm:$0xff] %v54
  %s69 = scalar_lea.vmem [#allocation1], 16
  %70 = vst [vmem:[%s69] ss:$2 sm:$0xff] %v55
  %v71 = vld.sshfl [vmem:[#allocation1] sm:$0xff pattern:$0x75316420]
  %v72 = vld.sshfl [vmem:[#allocation1 + $0x8] sm:$0xff pattern:$0x75316420]
  %v73 = vld.sshfl [vmem:[#allocation1 + $0x10] sm:$0xff pattern:$0x75316420]
  %v74 = vld.sshfl [vmem:[#allocation1 + $0x18] sm:$0xff pattern:$0x75316420]
  %vm75 = vcmask 31744
  %v77 = vsel %vm75, %v52, 0
  %v80 = vsel %vm75, %v53, 0
  %vm82 = vcmask 1043456
  %v83 = vsel %vm82, %v71, 0
  %v85 = vsel %vm82, %v72, 0
  %v87 = vsel %vm82, %v73, 0
  %v89 = vsel %vm82, %v74, 0
  %91 = vmatpush.msra.mxu0 0.0
  %92 = vmatpush.msra.mxu0 0.0
  %93 = vmatpush.msra.mxu0 0.0
  %94 = vmatpush.msra.mxu0 0.0
  %95 = vmatpush.msra.mxu0 0.0
  %96 = vmatpush.msra.mxu0 0.0
  %97 = vmatpush.msra.mxu0 0.0
  %98 = vmatpush.msra.mxu0 0.0
  %99 = vmatpush.msra.mxu0 0.0
  %100 = vmatpush.msra.mxu0 0.0
  %101 = vmatpush.msra.mxu0 0.0
  %102 = vmatpush.msra.mxu0 0.0
  %103 = vmatpush.msra.mxu0 0.0
  %104 = vmatpush.msra.mxu0 0.0
  %105 = vmatpush.msra.mxu0 0.0
  %106 = vmatpush.msra.mxu0 %v83
  %107 = vmatmul.f32.gmra.mxu0 %v77
  %v108 = vpop.f32.mrf.mxu0
  %v109 = vadd.f32 %v59, %v108
  %110 = vmatmul.f32.gmra.mxu0 %v80
  %v111 = vpop.f32.mrf.mxu0
  %v112 = vadd.f32 %v64, %v111
  %113 = vdwg.mxu0
  %114 = vmatpush.msra.mxu0 0.0
  %115 = vmatpush.msra.mxu0 0.0
  %116 = vmatpush.msra.mxu0 0.0
  %117 = vmatpush.msra.mxu0 0.0
  %118 = vmatpush.msra.mxu0 0.0
  %119 = vmatpush.msra.mxu0 0.0
  %120 = vmatpush.msra.mxu0 0.0
  %121 = vmatpush.msra.mxu0 0.0
  %122 = vmatpush.msra.mxu0 0.0
  %123 = vmatpush.msra.mxu0 0.0
  %124 = vmatpush.msra.mxu0 0.0
  %125 = vmatpush.msra.mxu0 0.0
  %126 = vmatpush.msra.mxu0 0.0
  %127 = vmatpush.msra.mxu0 0.0
  %128 = vmatpush.msra.mxu0 0.0
  %129 = vmatpush.msra.mxu0 %v85
  %130 = vmatmul.f32.gmra.mxu0 %v77
  %v131 = vpop.f32.mrf.mxu0
  %v132 = vadd.f32 %v59, %v131
  %133 = vmatmul.f32.gmra.mxu0 %v80
  %v134 = vpop.f32.mrf.mxu0
  %v135 = vadd.f32 %v64, %v134
  %136 = vdwg.mxu0
  %137 = vmatpush.msra.mxu0 0.0
  %138 = vmatpush.msra.mxu0 0.0
  %139 = vmatpush.msra.mxu0 0.0
  %140 = vmatpush.msra.mxu0 0.0
  %141 = vmatpush.msra.mxu0 0.0
  %142 = vmatpush.msra.mxu0 0.0
  %143 = vmatpush.msra.mxu0 0.0
  %144 = vmatpush.msra.mxu0 0.0
  %145 = vmatpush.msra.mxu0 0.0
  %146 = vmatpush.msra.mxu0 0.0
  %147 = vmatpush.msra.mxu0 0.0
  %148 = vmatpush.msra.mxu0 0.0
  %149 = vmatpush.msra.mxu0 0.0
  %150 = vmatpush.msra.mxu0 0.0
  %151 = vmatpush.msra.mxu0 0.0
  %152 = vmatpush.msra.mxu0 %v87
  %153 = vmatmul.f32.gmra.mxu0 %v77
  %v154 = vpop.f32.mrf.mxu0
  %v155 = vadd.f32 %v59, %v154
  %156 = vmatmul.f32.gmra.mxu0 %v80
  %v157 = vpop.f32.mrf.mxu0
  %v158 = vadd.f32 %v64, %v157
  %159 = vdwg.mxu0
  %160 = vmatpush.msra.mxu0 0.0
  %161 = vmatpush.msra.mxu0 0.0
  %162 = vmatpush.msra.mxu0 0.0
  %163 = vmatpush.msra.mxu0 0.0
  %164 = vmatpush.msra.mxu0 0.0
  %165 = vmatpush.msra.mxu0 0.0
  %166 = vmatpush.msra.mxu0 0.0
  %167 = vmatpush.msra.mxu0 0.0
  %168 = vmatpush.msra.mxu0 0.0
  %169 = vmatpush.msra.mxu0 0.0
  %170 = vmatpush.msra.mxu0 0.0
  %171 = vmatpush.msra.mxu0 0.0
  %172 = vmatpush.msra.mxu0 0.0
  %173 = vmatpush.msra.mxu0 0.0
  %174 = vmatpush.msra.mxu0 0.0
  %175 = vmatpush.msra.mxu0 %v89
  %176 = vmatmul.f32.gmra.mxu0 %v77
  %v177 = vpop.f32.mrf.mxu0
  %v178 = vadd.f32 %v59, %v177
  %179 = vmatmul.f32.gmra.mxu0 %v80
  %v180 = vpop.f32.mrf.mxu0
  %v181 = vadd.f32 %v64, %v180
  %182 = vdwg.mxu0
  %v183 = vmax.f32 %v109, 0.0
  %v184 = vmax.f32 %v132, 0.0
  %v185 = vmax.f32 %v155, 0.0
  %v186 = vmax.f32 %v178, 0.0
  %v187 = vmax.f32 %v112, 0.0
  %v188 = vmax.f32 %v135, 0.0
  %v189 = vmax.f32 %v158, 0.0
  %v190 = vmax.f32 %v181, 0.0
  %191 = vrot.lane.b32.xlu0 %v183, 1
  %v192 = vpop.permute.xlu0 %191
  %193 = vrot.lane.b32.xlu0 %v187, 1
  %v194 = vpop.permute.xlu0 %193
  %195 = vrot.lane.b32.xlu0 %v184, 1
  %v196 = vpop.permute.xlu0 %195
  %197 = vrot.lane.b32.xlu0 %v188, 1
  %v198 = vpop.permute.xlu0 %197
  %199 = vrot.lane.b32.xlu0 %v185, 1
  %v200 = vpop.permute.xlu0 %199
  %201 = vrot.lane.b32.xlu0 %v189, 1
  %v202 = vpop.permute.xlu0 %201
  %203 = vrot.lane.b32.xlu0 %v186, 1
  %v204 = vpop.permute.xlu0 %203
  %205 = vrot.lane.b32.xlu0 %v190, 1
  %v206 = vpop.permute.xlu0 %205
  %v207 = vlaneseq
  %v208 = vand.u32 %v207, 127
  %vm209 = vcmp.lt.s32.totalorder %v208, 1
  %v210 = vsel %vm209, %v200, %v204
  %v211 = vsel %vm209, %v202, %v206
  %v212 = vsel %vm209, %v196, %v200
  %v213 = vsel %vm209, %v198, %v202
  %v214 = vsel %vm209, %v192, %v196
  %v215 = vsel %vm209, %v194, %v198
  %v216 = vsel %vm209, %v204, %v192
  %v217 = vsel %vm209, %v206, %v194
  %v219 = vperm.slane %v41, 0
  %v220 = vperm.slane %v41, 1
  %v221 = vperm.slane %v41, 2
  %v222 = vperm.slane %v41, 3
  %v227 = vmul.f32 %v216, %v219
  %v228 = vmul.f32 %v214, %v220
  %v229 = vmul.f32 %v212, %v221
  %v230 = vmul.f32 %v210, %v222
  %v231 = vmul.f32 %v217, %v219
  %v232 = vmul.f32 %v215, %v220
  %v233 = vmul.f32 %v213, %v221
  %v234 = vmul.f32 %v211, %v222
  %235 = vrot.lane.b32.xlu0 %v183, 127
  %v236 = vpop.permute.xlu0 %235
  %237 = vrot.lane.b32.xlu0 %v187, 127
  %v238 = vpop.permute.xlu0 %237
  %239 = vrot.lane.b32.xlu0 %v184, 127
  %v240 = vpop.permute.xlu0 %239
  %241 = vrot.lane.b32.xlu0 %v188, 127
  %v242 = vpop.permute.xlu0 %241
  %243 = vrot.lane.b32.xlu0 %v185, 127
  %v244 = vpop.permute.xlu0 %243
  %245 = vrot.lane.b32.xlu0 %v189, 127
  %v246 = vpop.permute.xlu0 %245
  %247 = vrot.lane.b32.xlu0 %v186, 127
  %v248 = vpop.permute.xlu0 %247
  %249 = vrot.lane.b32.xlu0 %v190, 127
  %v250 = vpop.permute.xlu0 %249
  %vm251 = vcmp.lt.s32.totalorder %v208, 127
  %v252 = vsel %vm251, %v244, %v248
  %v253 = vsel %vm251, %v246, %v250
  %v254 = vsel %vm251, %v240, %v244
  %v255 = vsel %vm251, %v242, %v246
  %v256 = vsel %vm251, %v236, %v240
  %v257 = vsel %vm251, %v238, %v242
  %v258 = vsel %vm251, %v248, %v236
  %v259 = vsel %vm251, %v250, %v238
  %v261 = vperm.slane %v43, 0
  %v262 = vperm.slane %v43, 1
  %v263 = vperm.slane %v43, 2
  %v264 = vperm.slane %v43, 3
  %v269 = vmul.f32 %v256, %v261
  %v270 = vmul.f32 %v254, %v262
  %v271 = vmul.f32 %v252, %v263
  %v272 = vmul.f32 %v258, %v264
  %v273 = vmul.f32 %v257, %v261
  %v274 = vmul.f32 %v255, %v262
  %v275 = vmul.f32 %v253, %v263
  %v276 = vmul.f32 %v259, %v264
  %v277 = vld [vmem:[%s2] sm:$0xff]
  %v278 = vld [vmem:[%s2 + $0x8] sm:$0xff]
  %280 = vset.pattern.permute.xlu0 3
  %281 = vperm.xlu0 %280, %v277
  %v282 = vpop.permute.xlu0 %281
  %285 = vset.pattern.permute.xlu0 3
  %286 = vperm.xlu0 %285, %v278
  %v287 = vpop.permute.xlu0 %286
  %v289 = vmul.f32 %v227, %v282
  %v290 = vmul.f32 %v228, %v282
  %v291 = vmul.f32 %v229, %v282
  %v292 = vmul.f32 %v230, %v282
  %v293 = vmul.f32 %v231, %v287
  %v294 = vmul.f32 %v232, %v287
  %v295 = vmul.f32 %v233, %v287
  %v296 = vmul.f32 %v234, %v287
  %297 = vset.pattern.permute.xlu0 4
  %298 = vperm.xlu0 %297, %v277
  %v299 = vpop.permute.xlu0 %298
  %301 = vset.pattern.permute.xlu0 4
  %302 = vperm.xlu0 %301, %v278
  %v303 = vpop.permute.xlu0 %302
  %v305 = vmul.f32 %v183, %v299
  %v306 = vmul.f32 %v184, %v299
  %v307 = vmul.f32 %v185, %v299
  %v308 = vmul.f32 %v186, %v299
  %v309 = vmul.f32 %v187, %v303
  %v310 = vmul.f32 %v188, %v303
  %v311 = vmul.f32 %v189, %v303
  %v312 = vmul.f32 %v190, %v303
  %v313 = vadd.f32 %v289, %v305
  %v314 = vadd.f32 %v290, %v306
  %v315 = vadd.f32 %v291, %v307
  %v316 = vadd.f32 %v292, %v308
  %v317 = vadd.f32 %v293, %v309
  %v318 = vadd.f32 %v294, %v310
  %v319 = vadd.f32 %v295, %v311
  %v320 = vadd.f32 %v296, %v312
  %321 = vset.pattern.permute.xlu0 5
  %322 = vperm.xlu0 %321, %v277
  %v323 = vpop.permute.xlu0 %322
  %325 = vset.pattern.permute.xlu0 5
  %326 = vperm.xlu0 %325, %v278
  %v327 = vpop.permute.xlu0 %326
  %v329 = vmul.f32 %v269, %v323
  %v330 = vmul.f32 %v270, %v323
  %v331 = vmul.f32 %v271, %v323
  %v332 = vmul.f32 %v272, %v323
  %v333 = vmul.f32 %v273, %v327
  %v334 = vmul.f32 %v274, %v327
  %v335 = vmul.f32 %v275, %v327
  %v336 = vmul.f32 %v276, %v327
  %v337 = vadd.f32 %v313, %v329
  %v338 = vadd.f32 %v314, %v330
  %v339 = vadd.f32 %v315, %v331
  %v340 = vadd.f32 %v316, %v332
  %v341 = vadd.f32 %v317, %v333
  %v342 = vadd.f32 %v318, %v334
  %v343 = vadd.f32 %v319, %v335
  %v344 = vadd.f32 %v320, %v336
  %345 = vset.pattern.permute.xlu0 0
  %346 = vperm.xlu0 %345, %v277
  %v347 = vpop.permute.xlu0 %346
  %349 = vset.pattern.permute.xlu0 0
  %350 = vperm.xlu0 %349, %v278
  %v351 = vpop.permute.xlu0 %350
  %v353 = vmul.f32 %v227, %v347
  %v354 = vmul.f32 %v228, %v347
  %v355 = vmul.f32 %v229, %v347
  %v356 = vmul.f32 %v230, %v347
  %v357 = vmul.f32 %v231, %v351
  %v358 = vmul.f32 %v232, %v351
  %v359 = vmul.f32 %v233, %v351
  %v360 = vmul.f32 %v234, %v351
  %361 = vset.pattern.permute.xlu0 1
  %362 = vperm.xlu0 %361, %v277
  %v363 = vpop.permute.xlu0 %362
  %365 = vset.pattern.permute.xlu0 1
  %366 = vperm.xlu0 %365, %v278
  %v367 = vpop.permute.xlu0 %366
  %v369 = vmul.f32 %v183, %v363
  %v370 = vmul.f32 %v184, %v363
  %v371 = vmul.f32 %v185, %v363
  %v372 = vmul.f32 %v186, %v363
  %v373 = vmul.f32 %v187, %v367
  %v374 = vmul.f32 %v188, %v367
  %v375 = vmul.f32 %v189, %v367
  %v376 = vmul.f32 %v190, %v367
  %v377 = vadd.f32 %v353, %v369
  %v378 = vadd.f32 %v354, %v370
  %v379 = vadd.f32 %v355, %v371
  %v380 = vadd.f32 %v356, %v372
  %v381 = vadd.f32 %v357, %v373
  %v382 = vadd.f32 %v358, %v374
  %v383 = vadd.f32 %v359, %v375
  %v384 = vadd.f32 %v360, %v376
  %385 = vset.pattern.permute.xlu0 2
  %386 = vperm.xlu0 %385, %v277
  %v387 = vpop.permute.xlu0 %386
  %389 = vset.pattern.permute.xlu0 2
  %390 = vperm.xlu0 %389, %v278
  %v391 = vpop.permute.xlu0 %390
  %v393 = vmul.f32 %v269, %v387
  %v394 = vmul.f32 %v270, %v387
  %v395 = vmul.f32 %v271, %v387
  %v396 = vmul.f32 %v272, %v387
  %v397 = vmul.f32 %v273, %v391
  %v398 = vmul.f32 %v274, %v391
  %v399 = vmul.f32 %v275, %v391
  %v400 = vmul.f32 %v276, %v391
  %v401 = vadd.f32 %v377, %v393
  %v402 = vadd.f32 %v378, %v394
  %v403 = vadd.f32 %v379, %v395
  %v404 = vadd.f32 %v380, %v396
  %v405 = vadd.f32 %v381, %v397
  %v406 = vadd.f32 %v382, %v398
  %v407 = vadd.f32 %v383, %v399
  %v408 = vadd.f32 %v384, %v400
  %409 = vrot.lane.b32.xlu0 %v401, 16
  %v410 = vpop.permute.xlu0 %409
  %411 = vrot.lane.b32.xlu0 %v405, 16
  %v412 = vpop.permute.xlu0 %411
  %413 = vrot.lane.b32.xlu0 %v402, 16
  %v414 = vpop.permute.xlu0 %413
  %415 = vrot.lane.b32.xlu0 %v406, 16
  %v416 = vpop.permute.xlu0 %415
  %417 = vrot.lane.b32.xlu0 %v403, 16
  %v418 = vpop.permute.xlu0 %417
  %419 = vrot.lane.b32.xlu0 %v407, 16
  %v420 = vpop.permute.xlu0 %419
  %421 = vrot.lane.b32.xlu0 %v404, 16
  %v422 = vpop.permute.xlu0 %421
  %423 = vrot.lane.b32.xlu0 %v408, 16
  %v424 = vpop.permute.xlu0 %423
  %vm425 = vcmp.lt.s32.totalorder %v208, 16
  %v426 = vsel %vm425, %v418, %v422
  %v427 = vsel %vm425, %v420, %v424
  %v428 = vsel %vm425, %v414, %v418
  %v429 = vsel %vm425, %v416, %v420
  %v430 = vsel %vm425, %v410, %v414
  %v431 = vsel %vm425, %v412, %v416
  %v432 = vsel %vm425, %v422, %v410
  %v433 = vsel %vm425, %v424, %v412
  %v435 = vperm.slane %v45, 0
  %v436 = vperm.slane %v45, 1
  %v437 = vperm.slane %v45, 2
  %v438 = vperm.slane %v45, 3
  %v443 = vmul.f32 %v432, %v435
  %v444 = vmul.f32 %v430, %v436
  %v445 = vmul.f32 %v428, %v437
  %v446 = vmul.f32 %v426, %v438
  %v447 = vmul.f32 %v433, %v435
  %v448 = vmul.f32 %v431, %v436
  %v449 = vmul.f32 %v429, %v437
  %v450 = vmul.f32 %v427, %v438
  %v451 = vadd.f32 %v337, %v443
  %v452 = vadd.f32 %v338, %v444
  %v453 = vadd.f32 %v339, %v445
  %v454 = vadd.f32 %v340, %v446
  %v455 = vadd.f32 %v341, %v447
  %v456 = vadd.f32 %v342, %v448
  %v457 = vadd.f32 %v343, %v449
  %v458 = vadd.f32 %v344, %v450
  %459 = vset.pattern.permute.xlu0 6
  %460 = vperm.xlu0 %459, %v277
  %v461 = vpop.permute.xlu0 %460
  %463 = vset.pattern.permute.xlu0 6
  %464 = vperm.xlu0 %463, %v278
  %v465 = vpop.permute.xlu0 %464
  %v467 = vmul.f32 %v227, %v461
  %v468 = vmul.f32 %v228, %v461
  %v469 = vmul.f32 %v229, %v461
  %v470 = vmul.f32 %v230, %v461
  %v471 = vmul.f32 %v231, %v465
  %v472 = vmul.f32 %v232, %v465
  %v473 = vmul.f32 %v233, %v465
  %v474 = vmul.f32 %v234, %v465
  %475 = vset.pattern.permute.xlu0 7
  %476 = vperm.xlu0 %475, %v277
  %v477 = vpop.permute.xlu0 %476
  %479 = vset.pattern.permute.xlu0 7
  %480 = vperm.xlu0 %479, %v278
  %v481 = vpop.permute.xlu0 %480
  %v483 = vmul.f32 %v183, %v477
  %v484 = vmul.f32 %v184, %v477
  %v485 = vmul.f32 %v185, %v477
  %v486 = vmul.f32 %v186, %v477
  %v487 = vmul.f32 %v187, %v481
  %v488 = vmul.f32 %v188, %v481
  %v489 = vmul.f32 %v189, %v481
  %v490 = vmul.f32 %v190, %v481
  %v491 = vadd.f32 %v467, %v483
  %v492 = vadd.f32 %v468, %v484
  %v493 = vadd.f32 %v469, %v485
  %v494 = vadd.f32 %v470, %v486
  %v495 = vadd.f32 %v471, %v487
  %v496 = vadd.f32 %v472, %v488
  %v497 = vadd.f32 %v473, %v489
  %v498 = vadd.f32 %v474, %v490
  %499 = vset.pattern.permute.xlu0 8
  %500 = vperm.xlu0 %499, %v277
  %v501 = vpop.permute.xlu0 %500
  %503 = vset.pattern.permute.xlu0 8
  %504 = vperm.xlu0 %503, %v278
  %v505 = vpop.permute.xlu0 %504
  %v507 = vmul.f32 %v269, %v501
  %v508 = vmul.f32 %v270, %v501
  %v509 = vmul.f32 %v271, %v501
  %v510 = vmul.f32 %v272, %v501
  %v511 = vmul.f32 %v273, %v505
  %v512 = vmul.f32 %v274, %v505
  %v513 = vmul.f32 %v275, %v505
  %v514 = vmul.f32 %v276, %v505
  %v515 = vadd.f32 %v491, %v507
  %v516 = vadd.f32 %v492, %v508
  %v517 = vadd.f32 %v493, %v509
  %v518 = vadd.f32 %v494, %v510
  %v519 = vadd.f32 %v495, %v511
  %v520 = vadd.f32 %v496, %v512
  %v521 = vadd.f32 %v497, %v513
  %v522 = vadd.f32 %v498, %v514
  %523 = vrot.lane.b32.xlu0 %v515, 112
  %v524 = vpop.permute.xlu0 %523
  %525 = vrot.lane.b32.xlu0 %v519, 112
  %v526 = vpop.permute.xlu0 %525
  %527 = vrot.lane.b32.xlu0 %v516, 112
  %v528 = vpop.permute.xlu0 %527
  %529 = vrot.lane.b32.xlu0 %v520, 112
  %v530 = vpop.permute.xlu0 %529
  %531 = vrot.lane.b32.xlu0 %v517, 112
  %v532 = vpop.permute.xlu0 %531
  %533 = vrot.lane.b32.xlu0 %v521, 112
  %v534 = vpop.permute.xlu0 %533
  %535 = vrot.lane.b32.xlu0 %v518, 112
  %v536 = vpop.permute.xlu0 %535
  %537 = vrot.lane.b32.xlu0 %v522, 112
  %v538 = vpop.permute.xlu0 %537
  %vm539 = vcmp.lt.s32.totalorder %v208, 112
  %v540 = vsel %vm539, %v532, %v536
  %v541 = vsel %vm539, %v534, %v538
  %v542 = vsel %vm539, %v528, %v532
  %v543 = vsel %vm539, %v530, %v534
  %v544 = vsel %vm539, %v524, %v528
  %v545 = vsel %vm539, %v526, %v530
  %v546 = vsel %vm539, %v536, %v524
  %v547 = vsel %vm539, %v538, %v526
  %v549 = vperm.slane %v47, 0
  %v550 = vperm.slane %v47, 1
  %v551 = vperm.slane %v47, 2
  %v552 = vperm.slane %v47, 3
  %v557 = vmul.f32 %v544, %v549
  %v558 = vmul.f32 %v542, %v550
  %v559 = vmul.f32 %v540, %v551
  %v560 = vmul.f32 %v546, %v552
  %v561 = vmul.f32 %v545, %v549
  %v562 = vmul.f32 %v543, %v550
  %v563 = vmul.f32 %v541, %v551
  %v564 = vmul.f32 %v547, %v552
  %v565 = vadd.f32 %v451, %v557
  %v566 = vadd.f32 %v452, %v558
  %v567 = vadd.f32 %v453, %v559
  %v568 = vadd.f32 %v454, %v560
  %v569 = vadd.f32 %v455, %v561
  %v570 = vadd.f32 %v456, %v562
  %v571 = vadd.f32 %v457, %v563
  %v572 = vadd.f32 %v458, %v564
  %574 = vset.pattern.permute.xlu0 0
  %575 = vperm.xlu0 %574, %v34
  %v576 = vpop.permute.xlu0 %575
  %579 = vset.pattern.permute.xlu0 0
  %580 = vperm.xlu0 %579, %v35
  %v581 = vpop.permute.xlu0 %580
  %v583 = vadd.f32 %v565, %v576
  %v584 = vadd.f32 %v566, %v576
  %v585 = vadd.f32 %v567, %v576
  %v586 = vadd.f32 %v568, %v576
  %v587 = vadd.f32 %v569, %v581
  %v588 = vadd.f32 %v570, %v581
  %v589 = vadd.f32 %v571, %v581
  %v590 = vadd.f32 %v572, %v581
  %v591 = vmax.f32 %v583, 0.0
  %v592 = vmax.f32 %v584, 0.0
  %v593 = vmax.f32 %v585, 0.0
  %v594 = vmax.f32 %v586, 0.0
  %v595 = vmax.f32 %v587, 0.0
  %v596 = vmax.f32 %v588, 0.0
  %v597 = vmax.f32 %v589, 0.0
  %v598 = vmax.f32 %v590, 0.0
  %v603 = vrot.slane %v48, 4
  %v604 = vrot.slane %v49, 4
  %v605 = vrot.slane %v50, 4
  %v606 = vrot.slane %v51, 4
  %611 = vmatpush.xpose.msra.mxu0 0.0
  %612 = vmatpush.xpose.msra.mxu0 0.0
  %613 = vmatpush.xpose.msra.mxu0 0.0
  %614 = vmatpush.xpose.msra.mxu0 0.0
  %615 = vmatpush.xpose.msra.mxu0 0.0
  %616 = vmatpush.xpose.msra.mxu0 0.0
  %617 = vmatpush.xpose.msra.mxu0 0.0
  %618 = vmatpush.xpose.msra.mxu0 0.0
  %619 = vmatpush.xpose.msra.mxu0 0.0
  %620 = vmatpush.xpose.msra.mxu0 0.0
  %621 = vmatpush.xpose.msra.mxu0 0.0
  %622 = vmatpush.xpose.msra.mxu0 0.0
  %623 = vmatpush.xpose.msra.mxu0 0.0
  %624 = vmatpush.xpose.msra.mxu0 0.0
  %625 = vmatpush.xpose.msra.mxu0 0.0
  %626 = vmatpush.xpose.msra.mxu0 %v603
  %627 = vmatmul.f32.gmra.mxu0 %v591
  %v628 = vpop.f32.mrf.mxu0
  %v629 = vadd.f32 0.0, %v628
  %630 = vmatmul.f32.gmra.mxu0 %v595
  %v631 = vpop.f32.mrf.mxu0
  %v632 = vadd.f32 0.0, %v631
  %633 = vdwg.mxu0
  %634 = vmatpush.xpose.msra.mxu0 0.0
  %635 = vmatpush.xpose.msra.mxu0 0.0
  %636 = vmatpush.xpose.msra.mxu0 0.0
  %637 = vmatpush.xpose.msra.mxu0 0.0
  %638 = vmatpush.xpose.msra.mxu0 0.0
  %639 = vmatpush.xpose.msra.mxu0 0.0
  %640 = vmatpush.xpose.msra.mxu0 0.0
  %641 = vmatpush.xpose.msra.mxu0 0.0
  %642 = vmatpush.xpose.msra.mxu0 0.0
  %643 = vmatpush.xpose.msra.mxu0 0.0
  %644 = vmatpush.xpose.msra.mxu0 0.0
  %645 = vmatpush.xpose.msra.mxu0 0.0
  %646 = vmatpush.xpose.msra.mxu0 0.0
  %647 = vmatpush.xpose.msra.mxu0 0.0
  %648 = vmatpush.xpose.msra.mxu0 0.0
  %649 = vmatpush.xpose.msra.mxu0 %v604
  %650 = vmatmul.f32.gmra.mxu0 %v592
  %v651 = vpop.f32.mrf.mxu0
  %v652 = vadd.f32 %v629, %v651
  %653 = vmatmul.f32.gmra.mxu0 %v596
  %v654 = vpop.f32.mrf.mxu0
  %v655 = vadd.f32 %v632, %v654
  %656 = vdwg.mxu0
  %657 = vmatpush.xpose.msra.mxu0 0.0
  %658 = vmatpush.xpose.msra.mxu0 0.0
  %659 = vmatpush.xpose.msra.mxu0 0.0
  %660 = vmatpush.xpose.msra.mxu0 0.0
  %661 = vmatpush.xpose.msra.mxu0 0.0
  %662 = vmatpush.xpose.msra.mxu0 0.0
  %663 = vmatpush.xpose.msra.mxu0 0.0
  %664 = vmatpush.xpose.msra.mxu0 0.0
  %665 = vmatpush.xpose.msra.mxu0 0.0
  %666 = vmatpush.xpose.msra.mxu0 0.0
  %667 = vmatpush.xpose.msra.mxu0 0.0
  %668 = vmatpush.xpose.msra.mxu0 0.0
  %669 = vmatpush.xpose.msra.mxu0 0.0
  %670 = vmatpush.xpose.msra.mxu0 0.0
  %671 = vmatpush.xpose.msra.mxu0 0.0
  %672 = vmatpush.xpose.msra.mxu0 %v605
  %673 = vmatmul.f32.gmra.mxu0 %v593
  %v674 = vpop.f32.mrf.mxu0
  %v675 = vadd.f32 %v652, %v674
  %676 = vmatmul.f32.gmra.mxu0 %v597
  %v677 = vpop.f32.mrf.mxu0
  %v678 = vadd.f32 %v655, %v677
  %679 = vdwg.mxu0
  %680 = vmatpush.xpose.msra.mxu0 0.0
  %681 = vmatpush.xpose.msra.mxu0 0.0
  %682 = vmatpush.xpose.msra.mxu0 0.0
  %683 = vmatpush.xpose.msra.mxu0 0.0
  %684 = vmatpush.xpose.msra.mxu0 0.0
  %685 = vmatpush.xpose.msra.mxu0 0.0
  %686 = vmatpush.xpose.msra.mxu0 0.0
  %687 = vmatpush.xpose.msra.mxu0 0.0
  %688 = vmatpush.xpose.msra.mxu0 0.0
  %689 = vmatpush.xpose.msra.mxu0 0.0
  %690 = vmatpush.xpose.msra.mxu0 0.0
  %691 = vmatpush.xpose.msra.mxu0 0.0
  %692 = vmatpush.xpose.msra.mxu0 0.0
  %693 = vmatpush.xpose.msra.mxu0 0.0
  %694 = vmatpush.xpose.msra.mxu0 0.0
  %695 = vmatpush.xpose.msra.mxu0 %v606
  %696 = vmatmul.f32.gmra.mxu0 %v594
  %v697 = vpop.f32.mrf.mxu0
  %v698 = vadd.f32 %v675, %v697
  %699 = vmatmul.f32.gmra.mxu0 %v598
  %v700 = vpop.f32.mrf.mxu0
  %v701 = vadd.f32 %v678, %v700
  %702 = vdwg.mxu0
  %v703 = vmul.f32 %v698, 0.00390625
  %v704 = vmul.f32 %v701, 0.00390625
  %v705 = vld [vmem:[%s3] sm:$0xf]
  %707 = vset.pattern.permute.xlu0 0
  %708 = vperm.xlu0 %707, %v36
  %v709 = vpop.permute.xlu0 %708
  %vm711 = vcmask 130048
  %v713 = vsel %vm711, %v705, 0
  %715 = vmatpush.msra.mxu0 0.0
  %716 = vmatpush.msra.mxu0 0.0
  %717 = vmatpush.msra.mxu0 0.0
  %718 = vmatpush.msra.mxu0 0.0
  %719 = vmatpush.msra.mxu0 0.0
  %720 = vmatpush.msra.mxu0 0.0
  %721 = vmatpush.msra.mxu0 0.0
  %722 = vmatpush.msra.mxu0 0.0
  %723 = vmatpush.msra.mxu0 0.0
  %724 = vmatpush.msra.mxu0 0.0
  %725 = vmatpush.msra.mxu0 0.0
  %726 = vmatpush.msra.mxu0 0.0
  %727 = vmatpush.msra.mxu0 0.0
  %728 = vmatpush.msra.mxu0 0.0
  %729 = vmatpush.msra.mxu0 %v704
  %730 = vmatpush.msra.mxu0 %v703
  %731 = vmatmul.f32.gmra.mxu0 %v713
  %v732 = vpop.f32.mrf.mxu0
  %v733 = vadd.f32 %v709, %v732
  %734 = vdwg.mxu0
  %v735 = vmax.f32 %v733, 0.0
  %v736 = vld [vmem:[%s4] sm:$0xff]
  %v737 = vld [vmem:[%s4 + $0x8] sm:$0xff]
  %739 = vset.pattern.permute.xlu0 0
  %740 = vperm.xlu0 %739, %v37
  %v741 = vpop.permute.xlu0 %740
  %744 = vset.pattern.permute.xlu0 0
  %745 = vperm.xlu0 %744, %v38
  %v746 = vpop.permute.xlu0 %745
  %v749 = vsel %vm75, %v736, 0
  %v752 = vsel %vm75, %v737, 0
  %v755 = vsel %vm82, %v735, 0
  %757 = vmatpush.msra.mxu0 0.0
  %758 = vmatpush.msra.mxu0 0.0
  %759 = vmatpush.msra.mxu0 0.0
  %760 = vmatpush.msra.mxu0 0.0
  %761 = vmatpush.msra.mxu0 0.0
  %762 = vmatpush.msra.mxu0 0.0
  %763 = vmatpush.msra.mxu0 0.0
  %764 = vmatpush.msra.mxu0 0.0
  %765 = vmatpush.msra.mxu0 0.0
  %766 = vmatpush.msra.mxu0 0.0
  %767 = vmatpush.msra.mxu0 0.0
  %768 = vmatpush.msra.mxu0 0.0
  %769 = vmatpush.msra.mxu0 0.0
  %770 = vmatpush.msra.mxu0 0.0
  %771 = vmatpush.msra.mxu0 0.0
  %772 = vmatpush.msra.mxu0 %v755
  %773 = vmatmul.f32.gmra.mxu0 %v749
  %v774 = vpop.f32.mrf.mxu0
  %v775 = vadd.f32 %v741, %v774
  %776 = vmatmul.f32.gmra.mxu0 %v752
  %v777 = vpop.f32.mrf.mxu0
  %v778 = vadd.f32 %v746, %v777
  %779 = vdwg.mxu0
  %v780 = vxor.u32 %v775, 2147483648
  %v781 = vxor.u32 %v778, 2147483648
  %v782 = vmul.f32 %v780, 1.442695
  %v783 = vpow.pop %v782
  %v784 = vmul.f32 %v781, 1.442695
  %v785 = vpow.pop %v784
  %v786 = vadd.f32 %v783, 1.0
  %v787 = vadd.f32 %v785, 1.0
  %v788 = vrcp.pop %v786
  %v789 = vmul.f32 %v786, %v788
  %v790 = vsub.f32 1.0, %v789
  %v791 = vmul.f32 %v788, %v790
  %v792 = vadd.f32 %v788, %v791
  %vm793 = vweird.f32 %v786
  %vm794 = vweird.f32 %v788
  %vm795 = vmor %vm793, %vm794
  %v796 = vsel %vm795, %v788, %v792
  %v797 = vand.u32 2147483647, %v786
  %vm798 = vcmp.eq.f32.partialorder %v797, 8.507059e+37
  %v799 = vand.u32 %v786, 2147483648
  %v800 = vor.u32 1.1754944e-38, %v799
  %v801 = vsel %vm798, %v800, %v796
  %v802 = vmul.f32 1.0, %v801
  %v803 = vrcp.pop %v787
  %v804 = vmul.f32 %v787, %v803
  %v805 = vsub.f32 1.0, %v804
  %v806 = vmul.f32 %v803, %v805
  %v807 = vadd.f32 %v803, %v806
  %vm808 = vweird.f32 %v787
  %vm809 = vweird.f32 %v803
  %vm810 = vmor %vm808, %vm809
  %v811 = vsel %vm810, %v803, %v807
  %v812 = vand.u32 2147483647, %v787
  %vm813 = vcmp.eq.f32.partialorder %v812, 8.507059e+37
  %v814 = vand.u32 %v787, 2147483648
  %v815 = vor.u32 1.1754944e-38, %v814
  %v816 = vsel %vm813, %v815, %v811
  %v817 = vmul.f32 1.0, %v816
  %vm818 = vcmask 15360
  %v820 = vsel %vm818, %v802, 0
  %v823 = vsel %vm818, %v817, 0
  %vm825 = vcmask 1041408
  %v826 = vsel %vm825, %v603, 0
  %v828 = vsel %vm825, %v604, 0
  %v830 = vsel %vm825, %v605, 0
  %v832 = vsel %vm825, %v606, 0
  %834 = vmatpush.msra.mxu0 0.0
  %835 = vmatpush.msra.mxu0 0.0
  %836 = vmatpush.msra.mxu0 0.0
  %837 = vmatpush.msra.mxu0 0.0
  %838 = vmatpush.msra.mxu0 0.0
  %839 = vmatpush.msra.mxu0 0.0
  %840 = vmatpush.msra.mxu0 0.0
  %841 = vmatpush.msra.mxu0 0.0
  %842 = vmatpush.msra.mxu0 0.0
  %843 = vmatpush.msra.mxu0 0.0
  %844 = vmatpush.msra.mxu0 0.0
  %845 = vmatpush.msra.mxu0 0.0
  %846 = vmatpush.msra.mxu0 0.0
  %847 = vmatpush.msra.mxu0 0.0
  %848 = vmatpush.msra.mxu0 0.0
  %849 = vmatpush.msra.mxu0 %v826
  %850 = vmatmul.f32.gmra.mxu0 %v820
  %v851 = vpop.f32.mrf.mxu0
  %v852 = vadd.f32 0.0, %v851
  %853 = vmatmul.f32.gmra.mxu0 %v823
  %v854 = vpop.f32.mrf.mxu0
  %v855 = vadd.f32 0.0, %v854
  %856 = vdwg.mxu0
  %857 = vmatpush.msra.mxu0 0.0
  %858 = vmatpush.msra.mxu0 0.0
  %859 = vmatpush.msra.mxu0 0.0
  %860 = vmatpush.msra.mxu0 0.0
  %861 = vmatpush.msra.mxu0 0.0
  %862 = vmatpush.msra.mxu0 0.0
  %863 = vmatpush.msra.mxu0 0.0
  %864 = vmatpush.msra.mxu0 0.0
  %865 = vmatpush.msra.mxu0 0.0
  %866 = vmatpush.msra.mxu0 0.0
  %867 = vmatpush.msra.mxu0 0.0
  %868 = vmatpush.msra.mxu0 0.0
  %869 = vmatpush.msra.mxu0 0.0
  %870 = vmatpush.msra.mxu0 0.0
  %871 = vmatpush.msra.mxu0 0.0
  %872 = vmatpush.msra.mxu0 %v828
  %873 = vmatmul.f32.gmra.mxu0 %v820
  %v874 = vpop.f32.mrf.mxu0
  %v875 = vadd.f32 0.0, %v874
  %876 = vmatmul.f32.gmra.mxu0 %v823
  %v877 = vpop.f32.mrf.mxu0
  %v878 = vadd.f32 0.0, %v877
  %879 = vdwg.mxu0
  %880 = vmatpush.msra.mxu0 0.0
  %881 = vmatpush.msra.mxu0 0.0
  %882 = vmatpush.msra.mxu0 0.0
  %883 = vmatpush.msra.mxu0 0.0
  %884 = vmatpush.msra.mxu0 0.0
  %885 = vmatpush.msra.mxu0 0.0
  %886 = vmatpush.msra.mxu0 0.0
  %887 = vmatpush.msra.mxu0 0.0
  %888 = vmatpush.msra.mxu0 0.0
  %889 = vmatpush.msra.mxu0 0.0
  %890 = vmatpush.msra.mxu0 0.0
  %891 = vmatpush.msra.mxu0 0.0
  %892 = vmatpush.msra.mxu0 0.0
  %893 = vmatpush.msra.mxu0 0.0
  %894 = vmatpush.msra.mxu0 0.0
  %895 = vmatpush.msra.mxu0 %v830
  %896 = vmatmul.f32.gmra.mxu0 %v820
  %v897 = vpop.f32.mrf.mxu0
  %v898 = vadd.f32 0.0, %v897
  %899 = vmatmul.f32.gmra.mxu0 %v823
  %v900 = vpop.f32.mrf.mxu0
  %v901 = vadd.f32 0.0, %v900
  %902 = vdwg.mxu0
  %903 = vmatpush.msra.mxu0 0.0
  %904 = vmatpush.msra.mxu0 0.0
  %905 = vmatpush.msra.mxu0 0.0
  %906 = vmatpush.msra.mxu0 0.0
  %907 = vmatpush.msra.mxu0 0.0
  %908 = vmatpush.msra.mxu0 0.0
  %909 = vmatpush.msra.mxu0 0.0
  %910 = vmatpush.msra.mxu0 0.0
  %911 = vmatpush.msra.mxu0 0.0
  %912 = vmatpush.msra.mxu0 0.0
  %913 = vmatpush.msra.mxu0 0.0
  %914 = vmatpush.msra.mxu0 0.0
  %915 = vmatpush.msra.mxu0 0.0
  %916 = vmatpush.msra.mxu0 0.0
  %917 = vmatpush.msra.mxu0 0.0
  %918 = vmatpush.msra.mxu0 %v832
  %919 = vmatmul.f32.gmra.mxu0 %v820
  %v920 = vpop.f32.mrf.mxu0
  %v921 = vadd.f32 0.0, %v920
  %922 = vmatmul.f32.gmra.mxu0 %v823
  %v923 = vpop.f32.mrf.mxu0
  %v924 = vadd.f32 0.0, %v923
  %925 = vdwg.mxu0
  %v926 = vmul.f32 %v591, %v852
  %v927 = vmul.f32 %v592, %v875
  %v928 = vmul.f32 %v593, %v898
  %v929 = vmul.f32 %v594, %v921
  %v930 = vmul.f32 %v595, %v855
  %v931 = vmul.f32 %v596, %v878
  %v932 = vmul.f32 %v597, %v901
  %v933 = vmul.f32 %v598, %v924
  %v934 = vld [vmem:[%s5] sm:$0xf]
  %936 = vset.pattern.permute.xlu0 0
  %937 = vperm.xlu0 %936, %v39
  %v938 = vpop.permute.xlu0 %937
  %v941 = vsel %vm711, %v934, 0
  %943 = vmatpush.msra.mxu0 0.0
  %944 = vmatpush.msra.mxu0 0.0
  %945 = vmatpush.msra.mxu0 0.0
  %946 = vmatpush.msra.mxu0 0.0
  %947 = vmatpush.msra.mxu0 0.0
  %948 = vmatpush.msra.mxu0 0.0
  %949 = vmatpush.msra.mxu0 0.0
  %950 = vmatpush.msra.mxu0 0.0
  %951 = vmatpush.msra.mxu0 0.0
  %952 = vmatpush.msra.mxu0 0.0
  %953 = vmatpush.msra.mxu0 0.0
  %954 = vmatpush.msra.mxu0 0.0
  %955 = vmatpush.msra.mxu0 0.0
  %956 = vmatpush.msra.mxu0 0.0
  %957 = vmatpush.msra.mxu0 %v930
  %958 = vmatpush.msra.mxu0 %v926
  %959 = vmatmul.f32.gmra.mxu0 %v941
  %v960 = vpop.f32.mrf.mxu0
  %v961 = vadd.f32 %v938, %v960
  %962 = vdwg.mxu0
  %963 = vmatpush.msra.mxu0 0.0
  %964 = vmatpush.msra.mxu0 0.0
  %965 = vmatpush.msra.mxu0 0.0
  %966 = vmatpush.msra.mxu0 0.0
  %967 = vmatpush.msra.mxu0 0.0
  %968 = vmatpush.msra.mxu0 0.0
  %969 = vmatpush.msra.mxu0 0.0
  %970 = vmatpush.msra.mxu0 0.0
  %971 = vmatpush.msra.mxu0 0.0
  %972 = vmatpush.msra.mxu0 0.0
  %973 = vmatpush.msra.mxu0 0.0
  %974 = vmatpush.msra.mxu0 0.0
  %975 = vmatpush.msra.mxu0 0.0
  %976 = vmatpush.msra.mxu0 0.0
  %977 = vmatpush.msra.mxu0 %v931
  %978 = vmatpush.msra.mxu0 %v927
  %979 = vmatmul.f32.gmra.mxu0 %v941
  %v980 = vpop.f32.mrf.mxu0
  %v981 = vadd.f32 %v938, %v980
  %982 = vdwg.mxu0
  %983 = vmatpush.msra.mxu0 0.0
  %984 = vmatpush.msra.mxu0 0.0
  %985 = vmatpush.msra.mxu0 0.0
  %986 = vmatpush.msra.mxu0 0.0
  %987 = vmatpush.msra.mxu0 0.0
  %988 = vmatpush.msra.mxu0 0.0
  %989 = vmatpush.msra.mxu0 0.0
  %990 = vmatpush.msra.mxu0 0.0
  %991 = vmatpush.msra.mxu0 0.0
  %992 = vmatpush.msra.mxu0 0.0
  %993 = vmatpush.msra.mxu0 0.0
  %994 = vmatpush.msra.mxu0 0.0
  %995 = vmatpush.msra.mxu0 0.0
  %996 = vmatpush.msra.mxu0 0.0
  %997 = vmatpush.msra.mxu0 %v932
  %998 = vmatpush.msra.mxu0 %v928
  %999 = vmatmul.f32.gmra.mxu0 %v941
  %v1000 = vpop.f32.mrf.mxu0
  %v1001 = vadd.f32 %v938, %v1000
  %1002 = vdwg.mxu0
  %1003 = vmatpush.msra.mxu0 0.0
  %1004 = vmatpush.msra.mxu0 0.0
  %1005 = vmatpush.msra.mxu0 0.0
  %1006 = vmatpush.msra.mxu0 0.0
  %1007 = vmatpush.msra.mxu0 0.0
  %1008 = vmatpush.msra.mxu0 0.0
  %1009 = vmatpush.msra.mxu0 0.0
  %1010 = vmatpush.msra.mxu0 0.0
  %1011 = vmatpush.msra.mxu0 0.0
  %1012 = vmatpush.msra.mxu0 0.0
  %1013 = vmatpush.msra.mxu0 0.0
  %1014 = vmatpush.msra.mxu0 0.0
  %1015 = vmatpush.msra.mxu0 0.0
  %1016 = vmatpush.msra.mxu0 0.0
  %1017 = vmatpush.msra.mxu0 %v933
  %1018 = vmatpush.msra.mxu0 %v929
  %1019 = vmatmul.f32.gmra.mxu0 %v941
  %v1020 = vpop.f32.mrf.mxu0
  %v1021 = vadd.f32 %v938, %v1020
  %1022 = vdwg.mxu0
  %v1023 = vmax.f32 %v961, 0.0
  %v1024 = vmax.f32 %v981, 0.0
  %v1025 = vmax.f32 %v1001, 0.0
  %v1026 = vmax.f32 %v1021, 0.0
  %v1027 = vld [vmem:[%s6] sm:$0xf]
  %1029 = vset.pattern.permute.xlu0 0
  %1030 = vperm.xlu0 %1029, %v40
  %v1031 = vpop.permute.xlu0 %1030
  %v1034 = vsel %vm75, %v1027, 0
  %v1037 = vsel %vm82, %v1023, 0
  %v1040 = vsel %vm82, %v1024, 0
  %v1043 = vsel %vm82, %v1025, 0
  %v1046 = vsel %vm82, %v1026, 0
  %1048 = vmatpush.msra.mxu0 0.0
  %1049 = vmatpush.msra.mxu0 0.0
  %1050 = vmatpush.msra.mxu0 0.0
  %1051 = vmatpush.msra.mxu0 0.0
  %1052 = vmatpush.msra.mxu0 0.0
  %1053 = vmatpush.msra.mxu0 0.0
  %1054 = vmatpush.msra.mxu0 0.0
  %1055 = vmatpush.msra.mxu0 0.0
  %1056 = vmatpush.msra.mxu0 0.0
  %1057 = vmatpush.msra.mxu0 0.0
  %1058 = vmatpush.msra.mxu0 0.0
  %1059 = vmatpush.msra.mxu0 0.0
  %1060 = vmatpush.msra.mxu0 0.0
  %1061 = vmatpush.msra.mxu0 0.0
  %1062 = vmatpush.msra.mxu0 0.0
  %1063 = vmatpush.msra.mxu0 %v1037
  %1064 = vmatmul.f32.gmra.mxu0 %v1034
  %v1065 = vpop.f32.mrf.mxu0
  %v1066 = vadd.f32 %v1031, %v1065
  %1067 = vdwg.mxu0
  %1068 = vmatpush.msra.mxu0 0.0
  %1069 = vmatpush.msra.mxu0 0.0
  %1070 = vmatpush.msra.mxu0 0.0
  %1071 = vmatpush.msra.mxu0 0.0
  %1072 = vmatpush.msra.mxu0 0.0
  %1073 = vmatpush.msra.mxu0 0.0
  %1074 = vmatpush.msra.mxu0 0.0
  %1075 = vmatpush.msra.mxu0 0.0
  %1076 = vmatpush.msra.mxu0 0.0
  %1077 = vmatpush.msra.mxu0 0.0
  %1078 = vmatpush.msra.mxu0 0.0
  %1079 = vmatpush.msra.mxu0 0.0
  %1080 = vmatpush.msra.mxu0 0.0
  %1081 = vmatpush.msra.mxu0 0.0
  %1082 = vmatpush.msra.mxu0 0.0
  %1083 = vmatpush.msra.mxu0 %v1040
  %1084 = vmatmul.f32.gmra.mxu0 %v1034
  %v1085 = vpop.f32.mrf.mxu0
  %v1086 = vadd.f32 %v1031, %v1085
  %1087 = vdwg.mxu0
  %1088 = vmatpush.msra.mxu0 0.0
  %1089 = vmatpush.msra.mxu0 0.0
  %1090 = vmatpush.msra.mxu0 0.0
  %1091 = vmatpush.msra.mxu0 0.0
  %1092 = vmatpush.msra.mxu0 0.0
  %1093 = vmatpush.msra.mxu0 0.0
  %1094 = vmatpush.msra.mxu0 0.0
  %1095 = vmatpush.msra.mxu0 0.0
  %1096 = vmatpush.msra.mxu0 0.0
  %1097 = vmatpush.msra.mxu0 0.0
  %1098 = vmatpush.msra.mxu0 0.0
  %1099 = vmatpush.msra.mxu0 0.0
  %1100 = vmatpush.msra.mxu0 0.0
  %1101 = vmatpush.msra.mxu0 0.0
  %1102 = vmatpush.msra.mxu0 0.0
  %1103 = vmatpush.msra.mxu0 %v1043
  %1104 = vmatmul.f32.gmra.mxu0 %v1034
  %v1105 = vpop.f32.mrf.mxu0
  %v1106 = vadd.f32 %v1031, %v1105
  %1107 = vdwg.mxu0
  %1108 = vmatpush.msra.mxu0 0.0
  %1109 = vmatpush.msra.mxu0 0.0
  %1110 = vmatpush.msra.mxu0 0.0
  %1111 = vmatpush.msra.mxu0 0.0
  %1112 = vmatpush.msra.mxu0 0.0
  %1113 = vmatpush.msra.mxu0 0.0
  %1114 = vmatpush.msra.mxu0 0.0
  %1115 = vmatpush.msra.mxu0 0.0
  %1116 = vmatpush.msra.mxu0 0.0
  %1117 = vmatpush.msra.mxu0 0.0
  %1118 = vmatpush.msra.mxu0 0.0
  %1119 = vmatpush.msra.mxu0 0.0
  %1120 = vmatpush.msra.mxu0 0.0
  %1121 = vmatpush.msra.mxu0 0.0
  %1122 = vmatpush.msra.mxu0 0.0
  %1123 = vmatpush.msra.mxu0 %v1046
  %1124 = vmatmul.f32.gmra.mxu0 %v1034
  %v1125 = vpop.f32.mrf.mxu0
  %v1126 = vadd.f32 %v1031, %v1125
  %1127 = vdwg.mxu0
  %v1128 = vmax.f32 %v1066, 0.0
  %v1129 = vmax.f32 %v1086, 0.0
  %v1130 = vmax.f32 %v1106, 0.0
  %v1131 = vmax.f32 %v1126, 0.0
  %v1132 = vadd.f32 %v1023, %v1128
  %v1133 = vadd.f32 %v1024, %v1129
  %v1134 = vadd.f32 %v1025, %v1130
  %v1135 = vadd.f32 %v1026, %v1131
  %v1140 = vrot.slane %v1133, 4
  %v1141 = vrot.slane %v1135, 4
  %v1142 = vsel %vm82, %v1132, %v1140
  %v1143 = vsel %vm82, %v1134, %v1141
  %1146 = vst [vmem:[%s9] sm:$0xff] %v1142
  %1147 = vst [vmem:[%s9 + $0x8] sm:$0xff] %v1143
  // Predicated region
  $region38: #{mbconv_block.1} parent=0 // pred_check
    _
  $region39: #{mbconv_block.1} parent=0 // pred_check_branch
    %1149 = sbr.rel (0) target = $region41
  $region40: #{mbconv_block.1} parent=0 // pred_region
    _
  $region41: #{mbconv_block.1} parent=0 // pred_fallthru
    _
  // Predicated region
  $region42: #{mbconv_block.1} parent=0 // pred_check
    _
  $region43: #{mbconv_block.1} parent=0 // pred_check_branch
    %1151 = sbr.rel (0) target = $region45
  $region44: #{mbconv_block.1} parent=0 // pred_region
    _
  $region45: #{mbconv_block.1} parent=0 // pred_fallthru
    _

</llo_original>
